<compile_context>
chip_gen: v7x
topology: tpu7x:2x2x1
jax: 0.10.0
libtpu: 0.0.40
codegen_flags: <defaults>
</compile_context>

<pallas_src>
import functools

import jax
import jax.numpy as jnp
from jax import lax
from jax.experimental import pallas as pl
from jax.experimental.pallas import tpu as pltpu


def _mask_enlarger_kernel(x_ref, o_ref, *, H, W):
    """One block: (Nb, H*W) in VMEM; each sublane row is one flattened image."""
    HW = H * W
    x = x_ref[...].astype(jnp.float32)

    # Flattened position within each image along the lane axis.
    pos = lax.broadcasted_iota(jnp.int32, x.shape, 1)   # p = i*W + c
    col = pos % W                                       # c

    # Horizontal 3-tap sum, zero padded at the left/right image edges.
    # roll(x, +1)[p]      = x[p-1]   (left neighbour, invalid at c == 0)
    # roll(x, HW-1)[p]    = x[p+1]   (right neighbour, invalid at c == W-1)
    left = jnp.where(col >= 1, pltpu.roll(x, 1, axis=1), 0.0)
    right = jnp.where(col <= W - 2, pltpu.roll(x, HW - 1, axis=1), 0.0)
    row = x + left + right

    # Vertical 3-tap sum of the row sums, zero padded at top/bottom edges.
    # roll(row, W)[p]     = row[p-W] (row above, invalid for p < W)
    # roll(row, HW-W)[p]  = row[p+W] (row below, invalid for p >= (H-1)*W)
    up = jnp.where(pos >= W, pltpu.roll(row, W, axis=1), 0.0)
    down = jnp.where(pos < (H - 1) * W, pltpu.roll(row, HW - W, axis=1), 0.0)
    box = row + up + down

    # forward: conv(x) * x, with all nine conv weights == 1/9.
    o_ref[...] = (box * jnp.float32(1.0 / 9.0) * x).astype(o_ref.dtype)


@jax.jit
def mask_enlarger(x):
    # x: (N, 1, H, W) float32, NCHW like the PyTorch module.
    N, C, H, W = x.shape
    assert C == 1, "Mask_Enlarger is a 1->1 channel conv"
    HW = H * W
    x2 = x.reshape(N, HW)  # contiguous -> free reshape; lane axis = H*W

    itemsize = x2.dtype.itemsize
    # ~1 MiB of input per grid step; partial-batch blocks keep the sublane dim
    # a multiple of 8 (whole-batch blocks use the full dim, which is always ok).
    nb = max(1, (1 << 20) // (HW * itemsize))
    if nb >= N:
        nb = N
    else:
        nb = max(8, (nb // 8) * 8)
        nb = min(nb, N)
    # TODO(synk): very large images (H*W*itemsize >> 1 MiB) should switch to
    # H-strip tiling with a 1-row halo (second parallel grid axis for v7x).
    grid = (pl.cdiv(N, nb),)

    kernel = functools.partial(_mask_enlarger_kernel, H=H, W=W)
    out = pl.pallas_call(
        kernel,
        out_shape=jax.ShapeDtypeStruct((N, HW), x2.dtype),
        grid=grid,
        in_specs=[pl.BlockSpec((nb, HW), lambda i: (i, 0))],
        out_specs=pl.BlockSpec((nb, HW), lambda i: (i, 0)),
        compiler_params=pltpu.CompilerParams(
            dimension_semantics=("parallel",),
            vmem_limit_bytes=32 << 20,
        ),
        cost_estimate=pl.CostEstimate(
            flops=8 * N * HW,
            transcendentals=0,
            bytes_accessed=2 * N * HW * itemsize,
        ),
    )(x2)
    return out.reshape(N, C, H, W)


def reference(x):
    """Pure-JAX reference mirroring the PyTorch forward."""
    w = jnp.full((1, 1, 3, 3), 1.0 / 9.0, jnp.float32)
    conv = jax.lax.conv_general_dilated(
        x, w, window_strides=(1, 1), padding=((1, 1), (1, 1)),
        dimension_numbers=("NCHW", "OIHW", "NCHW"))
    return conv * x


if __name__ == "__main__":
    key = jax.random.PRNGKey(0)
    N, C, H, W = 2, 1, 16, 16
    # Deterministic mask-like input (values in [0, 1)).
    x = jax.random.uniform(key, (N, C, H, W), dtype=jnp.float32)

    out = jax.block_until_ready(mask_enlarger(x))
    ref = reference(x)

    assert out.shape == (N, C, H, W)
    assert jnp.allclose(out, ref, rtol=1e-5, atol=1e-5), "mismatch vs reference"

    print("KERNEL_OK")
</pallas_src>

<mosaic_0001>
module attributes {stable_mosaic.version = 11 : i64} {
  func.func @_mask_enlarger_kernel(%arg0: i32, %arg1: memref<2x256xf32, #tpu.memory_space<vmem>>, %arg2: memref<2x256xf32, #tpu.memory_space<vmem>>) attributes {dimension_semantics = [#tpu.dimension_semantics<parallel>], iteration_bounds = array<i64: 1>, scalar_prefetch = 0 : i64, scratch_operands = 0 : i64, tpu.core_type = #tpu.core_type<tc>, window_params = [{transform_indices = @transform_0, window_bounds = array<i64: 2, 256>}, {transform_indices = @transform_1, window_bounds = array<i64: 2, 256>}]} {
    %c0 = arith.constant 0 : index
    %c0_0 = arith.constant 0 : index
    %0 = vector.load %arg1[%c0, %c0_0] : memref<2x256xf32, #tpu.memory_space<vmem>>, vector<2x256xf32>
    %1 = tpu.iota {dimensions = array<i32: 1>} : vector<2x256xi32>
    %c16_i32 = arith.constant 16 : i32
    %c0_i32 = arith.constant 0 : i32
    %2 = arith.cmpi eq, %c16_i32, %c0_i32 : i32
    %c1_i32 = arith.constant 1 : i32
    %3 = arith.select %2, %c1_i32, %c16_i32 : i32
    %4 = vector.broadcast %3 : i32 to vector<2x256xi32>
    %5 = arith.remsi %1, %4 : vector<2x256xi32>
    %c0_i32_1 = arith.constant 0 : i32
    %6 = vector.broadcast %c0_i32_1 : i32 to vector<2x256xi32>
    %7 = arith.cmpi ne, %5, %6 : vector<2x256xi32>
    %c0_i32_2 = arith.constant 0 : i32
    %8 = vector.broadcast %c0_i32_2 : i32 to vector<2x256xi32>
    %9 = arith.cmpi slt, %5, %8 : vector<2x256xi32>
    %c0_i32_3 = arith.constant 0 : i32
    %10 = arith.cmpi slt, %3, %c0_i32_3 : i32
    %11 = vector.broadcast %10 : i1 to vector<2x256xi1>
    %12 = vector.broadcast %11 : vector<2x256xi1> to vector<2x256xi1>
    %13 = arith.xori %9, %12 : vector<2x256xi1>
    %14 = arith.andi %13, %7 : vector<2x256xi1>
    %15 = vector.broadcast %3 : i32 to vector<2x256xi32>
    %16 = arith.addi %5, %15 : vector<2x256xi32>
    %17 = arith.select %14, %16, %5 : vector<2x256xi1>, vector<2x256xi32>
    %c1_i32_4 = arith.constant 1 : i32
    %18 = vector.broadcast %c1_i32_4 : i32 to vector<2x256xi32>
    %19 = arith.cmpi sge, %17, %18 : vector<2x256xi32>
    %c1_i32_5 = arith.constant 1 : i32
    %20 = tpu.dynamic_rotate %0 by %c1_i32_5 dim 1 : vector<2x256xf32>, i32 -> vector<2x256xf32>
    %cst = arith.constant 0.000000e+00 : f32
    %21 = vector.broadcast %cst : f32 to vector<2x256xf32>
    %22 = arith.select %19, %20, %21 : vector<2x256xi1>, vector<2x256xf32>
    %c14_i32 = arith.constant 14 : i32
    %23 = vector.broadcast %c14_i32 : i32 to vector<2x256xi32>
    %24 = arith.cmpi sle, %17, %23 : vector<2x256xi32>
    %c255_i32 = arith.constant 255 : i32
    %25 = tpu.dynamic_rotate %0 by %c255_i32 dim 1 : vector<2x256xf32>, i32 -> vector<2x256xf32>
    %cst_6 = arith.constant 0.000000e+00 : f32
    %26 = vector.broadcast %cst_6 : f32 to vector<2x256xf32>
    %27 = arith.select %24, %25, %26 : vector<2x256xi1>, vector<2x256xf32>
    %28 = arith.addf %0, %22 : vector<2x256xf32>
    %29 = arith.addf %28, %27 : vector<2x256xf32>
    %c16_i32_7 = arith.constant 16 : i32
    %30 = vector.broadcast %c16_i32_7 : i32 to vector<2x256xi32>
    %31 = arith.cmpi sge, %1, %30 : vector<2x256xi32>
    %c16_i32_8 = arith.constant 16 : i32
    %32 = tpu.dynamic_rotate %29 by %c16_i32_8 dim 1 : vector<2x256xf32>, i32 -> vector<2x256xf32>
    %cst_9 = arith.constant 0.000000e+00 : f32
    %33 = vector.broadcast %cst_9 : f32 to vector<2x256xf32>
    %34 = arith.select %31, %32, %33 : vector<2x256xi1>, vector<2x256xf32>
    %c240_i32 = arith.constant 240 : i32
    %35 = vector.broadcast %c240_i32 : i32 to vector<2x256xi32>
    %36 = arith.cmpi slt, %1, %35 : vector<2x256xi32>
    %c240_i32_10 = arith.constant 240 : i32
    %37 = tpu.dynamic_rotate %29 by %c240_i32_10 dim 1 : vector<2x256xf32>, i32 -> vector<2x256xf32>
    %cst_11 = arith.constant 0.000000e+00 : f32
    %38 = vector.broadcast %cst_11 : f32 to vector<2x256xf32>
    %39 = arith.select %36, %37, %38 : vector<2x256xi1>, vector<2x256xf32>
    %40 = arith.addf %29, %34 : vector<2x256xf32>
    %41 = arith.addf %40, %39 : vector<2x256xf32>
    %cst_12 = arith.constant 0.111111112 : f32
    %42 = vector.broadcast %cst_12 : f32 to vector<2x256xf32>
    %43 = arith.mulf %41, %42 : vector<2x256xf32>
    %44 = arith.mulf %43, %0 : vector<2x256xf32>
    %c0_13 = arith.constant 0 : index
    %c0_14 = arith.constant 0 : index
    %45 = vector.load %arg2[%c0_13, %c0_14] : memref<2x256xf32, #tpu.memory_space<vmem>>, vector<2x256xf32>
    tpu.vector_store %arg2[%c0_13, %c0_14], %44 {strides = array<i32>} : memref<2x256xf32, #tpu.memory_space<vmem>>, vector<2x256xf32>,
    return
  }
  func.func @transform_0(%arg0: i32) -> (i32, i32) {
    %c0_i32 = arith.constant 0 : i32
    %c0_i32_0 = arith.constant 0 : i32
    return %arg0, %c0_i32 : i32, i32
  }
  func.func @transform_1(%arg0: i32) -> (i32, i32) {
    %c0_i32 = arith.constant 0 : i32
    %c0_i32_0 = arith.constant 0 : i32
    return %arg0, %c0_i32 : i32, i32
  }
}

</mosaic_0001>

<llo_original>
// kernel: mask_enlarger.1
$region0: #{mask_enlarger.1}
  #allocation0 [shape = 'u32[]', space=smem, size = 0x4, offset = 0x4, fixed_abs, tag = 'smem constant byte address 0x4 - core index']
  #allocation1 [shape = 'u32[144,128]{1,0:T(1,128)}', space=vmem, size = 0x12000, scoped, tag = 'internal scratch']
  %s0 = inlined_call_operand.vmem [shape: f32[2,256], index: 0, kind: input, shape index: {}]
  %s1 = inlined_call_operand.vmem [shape: f32[2,256], index: 1, kind: output, shape index: {}]
  %s2 = sld [smem:[#allocation0]]
  $region14: #{mask_enlarger.1} parent=0
    _
  %s4 = ssub.s32 1, %s2
  %s5 = scalar_select 0, %s4, %s2
  // Predicated region
  $region2: #{mask_enlarger.1} parent=0 // pred_check
    _
  $region3: #{mask_enlarger.1} parent=0 // pred_check_branch
    %7 = sbr.rel (0) target = $region5
  $region4: #{mask_enlarger.1} parent=0 // pred_region
    _
  $region5: #{mask_enlarger.1} parent=0 // pred_fallthru
    _
  %v8 = vld [vmem:[%s0] sm:$0xf]
  %v9 = vlaneseq
  %v10 = vand.u32 %v9, 127
  %v11 = vadd.s32 %v10, 128
  %vm12 = vcmp.lt.s32.totalorder %v10, 0
  %v13 = vsub.s32 0, %v10
  %v14 = vsel %vm12, %v13, %v10
  %v15 = vshrl.u32 %v14, 4
  %v16 = vand.u32 %v14, 15
  %v17 = vsub.s32 0, %v16
  %v18 = vsel %vm12, %v17, %v16
  %vm19 = vcmp.lt.s32.totalorder %v11, 0
  %v20 = vsub.s32 0, %v11
  %v21 = vsel %vm19, %v20, %v11
  %v22 = vshrl.u32 %v21, 4
  %v23 = vand.u32 %v21, 15
  %v24 = vsub.s32 0, %v23
  %v25 = vsel %vm19, %v24, %v23
  %vm26 = vcmp.ne.s32.totalorder %v18, 0
  %vm27 = vcmp.ne.s32.totalorder %v25, 0
  %vm28 = vcmp.lt.s32.totalorder %v18, 0
  %vm29 = vcmp.lt.s32.totalorder %v25, 0
  %vm30 = vmand %vm28, %vm26
  %vm31 = vmand %vm29, %vm27
  %v32 = vadd.s32 %v18, 16
  %v33 = vadd.s32 %v25, 16
  %v34 = vsel %vm30, %v32, %v18
  %v35 = vsel %vm31, %v33, %v25
  %vm36 = vcmp.ge.s32.totalorder %v34, 1
  %vm37 = vcmp.ge.s32.totalorder %v35, 1
  %v40 = vunpack.c.l.s4 1983009808
  %v41 = vunpack.c.0.s8 %v40
  %v42 = vlaneseq
  %v43 = vshrl.u32 %v42, 7
  %v44 = vsub.s32 %v41, %v43
  %v45 = vrot.slane %v8, %v44
  %v46 = vcombine.high %v45, %v45
  %49 = vrot.lane.b32.xlu0 %v45, 1
  %v50 = vpop.permute.xlu0 %49
  %51 = vrot.lane.b32.xlu0 %v46, 1
  %v52 = vpop.permute.xlu0 %51
  %vm53 = vcmp.lt.s32.totalorder %v10, 1
  %v54 = vsel %vm53, %v50, %v52
  %v55 = vsel %vm53, %v52, %v50
  %v56 = vsel %vm36, %v55, 0.0
  %v57 = vsel %vm37, %v54, 0.0
  %vm58 = vcmp.le.s32.totalorder %v34, 14
  %vm59 = vcmp.le.s32.totalorder %v35, 14
  %60 = vrot.lane.b32.xlu0 %v45, 127
  %v61 = vpop.permute.xlu0 %60
  %62 = vrot.lane.b32.xlu0 %v46, 127
  %v63 = vpop.permute.xlu0 %62
  %vm64 = vcmp.lt.s32.totalorder %v10, 127
  %v65 = vsel %vm64, %v61, %v63
  %v66 = vsel %vm64, %v63, %v61
  %v67 = vsel %vm58, %v65, 0.0
  %v68 = vsel %vm59, %v66, 0.0
  %v71 = vcombine.low %v56, %v57
  %v73 = vunpack.c.l.s4 1983009808
  %v74 = vunpack.c.0.s8 %v73
  %v75 = vlaneseq
  %v76 = vshrl.u32 %v75, 7
  %v77 = vsub.s32 %v74, %v76
  %v78 = vrot.slane %v71, %v77
  %v80 = vadd.f32 %v8, %v78
  %v83 = vcombine.low %v67, %v68
  %v85 = vunpack.c.l.s4 1983009808
  %v86 = vunpack.c.0.s8 %v85
  %v87 = vlaneseq
  %v88 = vshrl.u32 %v87, 7
  %v89 = vsub.s32 %v86, %v88
  %v90 = vrot.slane %v83, %v89
  %v92 = vadd.f32 %v80, %v90
  %vm93 = vcmp.ge.s32.totalorder %v10, 16
  %vm94 = vcmp.ge.s32.totalorder %v11, 16
  %v97 = vunpack.c.l.s4 1983009808
  %v98 = vunpack.c.0.s8 %v97
  %v99 = vlaneseq
  %v100 = vshrl.u32 %v99, 7
  %v101 = vsub.s32 %v98, %v100
  %v102 = vrot.slane %v92, %v101
  %v103 = vcombine.high %v102, %v102
  %106 = vrot.lane.b32.xlu0 %v102, 16
  %v107 = vpop.permute.xlu0 %106
  %108 = vrot.lane.b32.xlu0 %v103, 16
  %v109 = vpop.permute.xlu0 %108
  %vm110 = vcmp.lt.s32.totalorder %v10, 16
  %v111 = vsel %vm110, %v107, %v109
  %v112 = vsel %vm110, %v109, %v107
  %v113 = vsel %vm93, %v112, 0.0
  %v114 = vsel %vm94, %v111, 0.0
  %vm115 = vcmp.lt.s32.totalorder %v10, 240
  %vm116 = vcmp.lt.s32.totalorder %v11, 240
  %117 = vrot.lane.b32.xlu0 %v102, 112
  %v118 = vpop.permute.xlu0 %117
  %119 = vrot.lane.b32.xlu0 %v103, 112
  %v120 = vpop.permute.xlu0 %119
  %vm121 = vcmp.lt.s32.totalorder %v10, 112
  %v122 = vsel %vm121, %v118, %v120
  %v123 = vsel %vm121, %v120, %v118
  %v124 = vsel %vm115, %v122, 0.0
  %v125 = vsel %vm116, %v123, 0.0
  %v128 = vcombine.low %v113, %v114
  %v130 = vunpack.c.l.s4 1983009808
  %v131 = vunpack.c.0.s8 %v130
  %v132 = vlaneseq
  %v133 = vshrl.u32 %v132, 7
  %v134 = vsub.s32 %v131, %v133
  %v135 = vrot.slane %v128, %v134
  %v137 = vadd.f32 %v92, %v135
  %v140 = vcombine.low %v124, %v125
  %v142 = vunpack.c.l.s4 1983009808
  %v143 = vunpack.c.0.s8 %v142
  %v144 = vlaneseq
  %v145 = vshrl.u32 %v144, 7
  %v146 = vsub.s32 %v143, %v145
  %v147 = vrot.slane %v140, %v146
  %v149 = vadd.f32 %v137, %v147
  %v150 = vmul.f32 %v149, 0.11111111
  %v151 = vmul.f32 %v150, %v8
  %152 = vst [vmem:[%s1] sm:$0xf] %v151
  // Predicated region
  $region6: #{mask_enlarger.1} parent=0 // pred_check
    _
  $region7: #{mask_enlarger.1} parent=0 // pred_check_branch
    %154 = sbr.rel (0) target = $region9
  $region8: #{mask_enlarger.1} parent=0 // pred_region
    _
  $region9: #{mask_enlarger.1} parent=0 // pred_fallthru
    _
  // Predicated region
  $region10: #{mask_enlarger.1} parent=0 // pred_check
    _
  $region11: #{mask_enlarger.1} parent=0 // pred_check_branch
    %156 = sbr.rel (0) target = $region13
  $region12: #{mask_enlarger.1} parent=0 // pred_region
    _
  $region13: #{mask_enlarger.1} parent=0 // pred_fallthru
    _

</llo_original>
